<compile_context>
chip_gen: v7x
topology: tpu7x:2x2x1
jax: 0.10.0
libtpu: 0.0.40
codegen_flags: <defaults>
</compile_context>

<pallas_src>
import jax
import jax.numpy as jnp
from jax.experimental import pallas as pl
from jax.experimental.pallas import tpu as pltpu


# ----------------------------- Pallas kernel --------------------------------

def fused_clip_kernel(ids_ref, mask_ref, tok_emb_ref, w_txt_ref, b_txt_ref,
                      pooled_img_ref, w_vis_ref, b_vis_ref,
                      txt_ref, img_ref, sim_ref, loss_ref):
    B, L = ids_ref.shape
    V = tok_emb_ref.shape[0]

    # ---- text encoder: gather-free masked mean pool + linear ----------------
    # counts[b, v] = sum_l mask[b, l] * 1[ids[b, l] == v]   (small integers,
    # exact in bf16), so masked_sum(emb[ids]) == counts @ tok_embedding (MXU).
    ids = ids_ref[...]                                            # (B, L) i32
    mask = mask_ref[...]                                          # (B, L) f32
    vocab_iota = jax.lax.broadcasted_iota(jnp.int32, (L, V), 1)   # (L, V)
    onehot = (ids[:, :, None] == vocab_iota[None, :, :]).astype(jnp.float32)
    counts = jnp.sum(onehot * mask[:, :, None], axis=1)           # (B, V)
    denom = jnp.maximum(jnp.sum(mask, axis=1, keepdims=True), 1.0)  # (B, 1)

    summed_t = jnp.dot(counts.astype(jnp.bfloat16), tok_emb_ref[...],
                       preferred_element_type=jnp.float32)        # (B, D) f32
    # exact reciprocal keeps the pooling bit-close to the reference
    pooled_t = summed_t * pl.reciprocal(denom)                    # (B, D) f32
    txt = (jnp.dot(pooled_t.astype(jnp.bfloat16), w_txt_ref[...],
                   preferred_element_type=jnp.float32)
           + b_txt_ref[...])                                      # (B, E) f32
    txt_ref[...] = txt

    # ---- vision encoder: (patch mean-pool folded in wrapper) + linear --------
    img = (jnp.dot(pooled_img_ref[...].astype(jnp.bfloat16), w_vis_ref[...],
                   preferred_element_type=jnp.float32)
           + b_vis_ref[...])                                      # (B, E) f32
    img_ref[...] = img

    # ---- CLIP head: L2 normalize (rsqrt -> EUP), similarity, symmetric CE ----
    # F.normalize(x, dim=1) = x / max(||x||, 1e-12) == x * rsqrt(max(||x||^2, 1e-24))
    img_ss = jnp.sum(img * img, axis=1, keepdims=True)            # (B, 1)
    txt_ss = jnp.sum(txt * txt, axis=1, keepdims=True)            # (B, 1)
    img_n = img * jax.lax.rsqrt(jnp.maximum(img_ss, 1e-24))
    txt_n = txt * jax.lax.rsqrt(jnp.maximum(txt_ss, 1e-24))
    img_mx = img_n.astype(jnp.bfloat16)                           # MXU operands
    txt_mx = txt_n.astype(jnp.bfloat16)

    # sim[i, j] = dot(img_n[i], txt_n[j]) -- rhs contracts on dim 1, no .T /
    # XLU transpose before the MXU push.
    sim = jax.lax.dot_general(img_mx, txt_mx,
                              dimension_numbers=(((1,), (1,)), ((), ())),
                              preferred_element_type=jnp.float32)  # (B, B)
    sim_ref[...] = sim

    # diag(sim) from the SAME bf16-rounded operands (exact f32 products on the
    # VPU), so the loss stays consistent with the MXU-accumulated diagonal.
    diag = jnp.sum(img_mx.astype(jnp.float32) * txt_mx.astype(jnp.float32),
                   axis=1, keepdims=True)                         # (B, 1)

    # cross_entropy(sim,   arange) = mean_i(logsumexp(sim[i, :]) - sim[i, i])
    # cross_entropy(sim.T, arange) = mean_j(logsumexp(sim[:, j]) - sim[j, j])
    m_r = jnp.max(sim, axis=1, keepdims=True)
    lse_r = jnp.log(jnp.sum(jnp.exp(sim - m_r), axis=1, keepdims=True)) + m_r  # (B,1)
    m_c = jnp.max(sim, axis=0, keepdims=True)
    lse_c = jnp.log(jnp.sum(jnp.exp(sim - m_c), axis=0, keepdims=True)) + m_c  # (1,B)

    loss2d = (jnp.sum(lse_r - diag, axis=0, keepdims=True)
              + jnp.sum(lse_c, axis=1, keepdims=True)
              - jnp.sum(diag, axis=0, keepdims=True)) * (0.5 / B)  # (1, 1)
    loss_ref[0, 0] = loss2d[0, 0]                                  # scalar -> SMEM


# ------------------------------ wrappers -------------------------------------

_VMEM = pl.BlockSpec(memory_space=pltpu.MemorySpace.VMEM)
_SMEM = pl.BlockSpec(memory_space=pltpu.MemorySpace.SMEM)


def fashion_clipich_step(text, image, params, patch=4):
    """Single fused kernel: encoders + normalize + similarity + clip_loss.

    Returns (text_embeds, image_embeds, similarity, loss) — the full
    validate/train hot path of FashionClipich.
    """
    ids = text["input_ids"].astype(jnp.int32)                      # (B, L)
    mask = text["attention_mask"].astype(jnp.float32)               # (B, L)

    # Vision patch mean-pool folded algebraically: mean over the patch-grid
    # axes keeps the (C, P, P) feature ordering of the original patchify, so
    # no 6-D transpose and no (B, N_patches, K) HBM round-trip.
    B, C, H, W = image.shape
    P = patch
    pooled_img = image.reshape(B, C, H // P, P, W // P, P).mean(axis=(2, 4))
    pooled_img = pooled_img.reshape(B, C * P * P).astype(jnp.float32)  # (B, K)

    # MXU operands in bf16 (accumulation stays f32 inside the kernel).  At
    # production sizes store the params in bf16 to also halve their DMA.
    tok_emb = params["tok_embedding"].astype(jnp.bfloat16)          # (V, D)
    w_text = params["w_text"].astype(jnp.bfloat16)                  # (D, E)
    w_vis = params["w_vis"].astype(jnp.bfloat16)                    # (K, E)

    E = params["w_text"].shape[1]

    txt, img, sim, loss = pl.pallas_call(
        fused_clip_kernel,
        out_shape=(
            jax.ShapeDtypeStruct((B, E), jnp.float32),   # text_embeds
            jax.ShapeDtypeStruct((B, E), jnp.float32),   # image_embeds
            jax.ShapeDtypeStruct((B, B), jnp.float32),   # similarity
            jax.ShapeDtypeStruct((1, 1), jnp.float32),   # clip loss (SMEM)
        ),
        in_specs=[_VMEM] * 8,
        out_specs=(_VMEM, _VMEM, _VMEM, _SMEM),
    )(ids, mask, tok_emb, w_text, params["b_text"],
      pooled_img, w_vis, params["b_vis"])
    return txt, img, sim, loss[0, 0]


def fashion_clipich_forward(text, image, params, patch=4):
    """Mirrors FashionClipich.forward: returns (text_embeds, image_embeds)."""
    txt, img, _, _ = fashion_clipich_step(text, image, params, patch)
    return txt, img


# ------------------------------ reference ------------------------------------

def _patchify_ref(image_nchw, patch):
    """Naive patchify (with transpose) — reference only."""
    B, C, H, W = image_nchw.shape
    P = patch
    x = image_nchw.reshape(B, C, H // P, P, W // P, P)
    x = x.transpose(0, 2, 4, 1, 3, 5)                      # (B, H/P, W/P, C, P, P)
    return x.reshape(B, (H // P) * (W // P), C * P * P).astype(jnp.float32)


def _reference(text, image, params, patch=4):
    tok_emb = jnp.take(params["tok_embedding"], text["input_ids"], axis=0)
    mask = text["attention_mask"].astype(jnp.float32)
    pooled_t = jnp.sum(tok_emb * mask[:, :, None], axis=1) / jnp.maximum(
        jnp.sum(mask, axis=1, keepdims=True), 1.0)
    txt = pooled_t @ params["w_text"] + params["b_text"]

    patches = _patchify_ref(image, patch)
    img = jnp.mean(patches, axis=1) @ params["w_vis"] + params["b_vis"]

    img_n = img / jnp.maximum(jnp.linalg.norm(img, axis=1, keepdims=True), 1e-12)
    txt_n = txt / jnp.maximum(jnp.linalg.norm(txt, axis=1, keepdims=True), 1e-12)
    sim = img_n @ txt_n.T
    labels = jnp.arange(sim.shape[0])
    lse_r = jax.nn.logsumexp(sim, axis=1)
    lse_c = jax.nn.logsumexp(sim, axis=0)
    diag = sim[labels, labels]
    loss = 0.5 * (jnp.mean(lse_r - diag) + jnp.mean(lse_c - diag))
    return txt, img, sim, loss


# -------------------------------- main ----------------------------------------

if __name__ == "__main__":
    key = jax.random.PRNGKey(0)
    # E = 128 keeps every (B, E) store lane-dense (perf review).
    B, L, VOCAB, D_TXT, EMB = 8, 8, 64, 32, 128
    C, H, W, P = 3, 16, 16, 4
    K_VIS = C * P * P

    k0, k1, k2, k3, k4, k5, k6 = jax.random.split(key, 7)
    params = {
        "tok_embedding": jax.random.normal(k0, (VOCAB, D_TXT), jnp.float32) * 0.1,
        "w_text": jax.random.normal(k1, (D_TXT, EMB), jnp.float32) * 0.1,
        "b_text": jax.random.normal(k2, (1, EMB), jnp.float32) * 0.01,
        "w_vis": jax.random.normal(k3, (K_VIS, EMB), jnp.float32) * 0.1,
        "b_vis": jax.random.normal(k4, (1, EMB), jnp.float32) * 0.01,
    }

    input_ids = jax.random.randint(k5, (B, L), 0, VOCAB)
    attention_mask = jnp.ones((B, L), jnp.int32).at[:, L // 2:].set(
        jax.random.bernoulli(k6, 0.7, (B, L // 2)).astype(jnp.int32))
    text = {"input_ids": input_ids, "attention_mask": attention_mask}
    image = jax.random.normal(jax.random.fold_in(key, 99), (B, C, H, W), jnp.float32)

    # fused hot path: encoders + normalize + similarity + clip_loss in ONE kernel
    text_embeds, image_embeds, sim, loss = fashion_clipich_step(text, image, params, P)
    jax.block_until_ready((text_embeds, image_embeds, sim, loss))

    # correctness check vs pure-f32 pure-JAX reference.  Tolerances account for
    # bf16 MXU operands (f32 accumulation): ~0.4% operand rounding across two
    # matmul stages -> few e-3 absolute drift on embeds / sim / loss.
    ref_txt, ref_img, ref_sim, ref_loss = _reference(text, image, params, P)
    assert jnp.allclose(text_embeds, ref_txt, atol=5e-3, rtol=2e-2), "text embeds mismatch"
    assert jnp.allclose(image_embeds, ref_img, atol=5e-3, rtol=2e-2), "image embeds mismatch"
    assert jnp.allclose(sim, ref_sim, atol=2e-2), "similarity mismatch"
    assert jnp.allclose(loss, ref_loss, atol=2e-2), "loss mismatch"

    print("KERNEL_OK")
</pallas_src>

<mosaic_0001>
module attributes {stable_mosaic.version = 11 : i64} {
  func.func @fused_clip_kernel(%arg0: memref<8x8xi32, #tpu.memory_space<vmem>>, %arg1: memref<8x8xf32, #tpu.memory_space<vmem>>, %arg2: memref<64x32xbf16, #tpu.memory_space<vmem>>, %arg3: memref<32x128xbf16, #tpu.memory_space<vmem>>, %arg4: memref<1x128xf32, #tpu.memory_space<vmem>>, %arg5: memref<8x48xf32, #tpu.memory_space<vmem>>, %arg6: memref<48x128xbf16, #tpu.memory_space<vmem>>, %arg7: memref<1x128xf32, #tpu.memory_space<vmem>>, %arg8: memref<8x128xf32, #tpu.memory_space<vmem>>, %arg9: memref<8x128xf32, #tpu.memory_space<vmem>>, %arg10: memref<8x8xf32, #tpu.memory_space<vmem>>, %arg11: memref<1x1xf32, #tpu.memory_space<smem>>) attributes {dimension_semantics = [], scalar_prefetch = 0 : i64, scratch_operands = 0 : i64, tpu.core_type = #tpu.core_type<tc>} {
    %c0 = arith.constant 0 : index
    %c0_0 = arith.constant 0 : index
    %0 = vector.load %arg0[%c0, %c0_0] : memref<8x8xi32, #tpu.memory_space<vmem>>, vector<8x8xi32>
    %c0_1 = arith.constant 0 : index
    %c0_2 = arith.constant 0 : index
    %1 = vector.load %arg1[%c0_1, %c0_2] : memref<8x8xf32, #tpu.memory_space<vmem>>, vector<8x8xf32>
    %2 = tpu.iota {dimensions = array<i32: 1>} : vector<8x64xi32>
    %3 = vector.shape_cast %0 : vector<8x8xi32> to vector<8x8x1xi32>
    %4 = vector.shape_cast %2 : vector<8x64xi32> to vector<1x8x64xi32>
    %5 = vector.broadcast %3 : vector<8x8x1xi32> to vector<8x8x64xi32>
    %6 = vector.broadcast %4 : vector<1x8x64xi32> to vector<8x8x64xi32>
    %7 = arith.cmpi eq, %5, %6 : vector<8x8x64xi32>
    %8 = arith.extui %7 : vector<8x8x64xi1> to vector<8x8x64xi32>
    %9 = arith.sitofp %8 : vector<8x8x64xi32> to vector<8x8x64xf32>
    %10 = vector.shape_cast %1 : vector<8x8xf32> to vector<8x8x1xf32>
    %11 = vector.broadcast %10 : vector<8x8x1xf32> to vector<8x8x64xf32>
    %12 = arith.mulf %9, %11 : vector<8x8x64xf32>
    %cst = arith.constant dense<0.000000e+00> : vector<8x64xf32>
    %13 = vector.multi_reduction <add>, %12, %cst [1] : vector<8x8x64xf32> to vector<8x64xf32>
    %cst_3 = arith.constant dense<0.000000e+00> : vector<8xf32>
    %14 = vector.multi_reduction <add>, %1, %cst_3 [1] : vector<8x8xf32> to vector<8xf32>
    %15 = vector.shape_cast %14 : vector<8xf32> to vector<8x1xf32>
    %cst_4 = arith.constant 1.000000e+00 : f32
    %16 = vector.broadcast %cst_4 : f32 to vector<8x1xf32>
    %17 = arith.maximumf %15, %16 : vector<8x1xf32>
    %18 = arith.truncf %13 : vector<8x64xf32> to vector<8x64xbf16>
    %c0_5 = arith.constant 0 : index
    %c0_6 = arith.constant 0 : index
    %19 = vector.load %arg2[%c0_5, %c0_6] : memref<64x32xbf16, #tpu.memory_space<vmem>>, vector<64x32xbf16>
    %cst_7 = arith.constant dense<0.000000e+00> : vector<8x32xf32>
    %20 = tpu.matmul %18, %19, %cst_7 {dimension_numbers = #tpu.dot_dimension_numbers<[1], [0], [0], [1], [0, 0, 1, 1], [], []>} : vector<8x64xbf16>, vector<64x32xbf16>, vector<8x32xf32> -> vector<8x32xf32>
    %21 = tpu.reciprocal %17 : vector<8x1xf32> -> vector<8x1xf32>
    %22 = vector.broadcast %21 : vector<8x1xf32> to vector<8x32xf32>
    %23 = arith.mulf %20, %22 : vector<8x32xf32>
    %24 = arith.truncf %23 : vector<8x32xf32> to vector<8x32xbf16>
    %c0_8 = arith.constant 0 : index
    %c0_9 = arith.constant 0 : index
    %25 = vector.load %arg3[%c0_8, %c0_9] : memref<32x128xbf16, #tpu.memory_space<vmem>>, vector<32x128xbf16>
    %cst_10 = arith.constant dense<0.000000e+00> : vector<8x128xf32>
    %26 = tpu.matmul %24, %25, %cst_10 {dimension_numbers = #tpu.dot_dimension_numbers<[1], [0], [0], [1], [0, 0, 1, 1], [], []>} : vector<8x32xbf16>, vector<32x128xbf16>, vector<8x128xf32> -> vector<8x128xf32>
    %c0_11 = arith.constant 0 : index
    %c0_12 = arith.constant 0 : index
    %27 = vector.load %arg4[%c0_11, %c0_12] : memref<1x128xf32, #tpu.memory_space<vmem>>, vector<1x128xf32>
    %28 = vector.broadcast %27 : vector<1x128xf32> to vector<8x128xf32>
    %29 = arith.addf %26, %28 : vector<8x128xf32>
    %c0_13 = arith.constant 0 : index
    %c0_14 = arith.constant 0 : index
    %30 = vector.load %arg8[%c0_13, %c0_14] : memref<8x128xf32, #tpu.memory_space<vmem>>, vector<8x128xf32>
    tpu.vector_store %arg8[%c0_13, %c0_14], %29 {strides = array<i32>} : memref<8x128xf32, #tpu.memory_space<vmem>>, vector<8x128xf32>,
    %c0_15 = arith.constant 0 : index
    %c0_16 = arith.constant 0 : index
    %31 = vector.load %arg5[%c0_15, %c0_16] : memref<8x48xf32, #tpu.memory_space<vmem>>, vector<8x48xf32>
    %32 = arith.truncf %31 : vector<8x48xf32> to vector<8x48xbf16>
    %c0_17 = arith.constant 0 : index
    %c0_18 = arith.constant 0 : index
    %33 = vector.load %arg6[%c0_17, %c0_18] : memref<48x128xbf16, #tpu.memory_space<vmem>>, vector<48x128xbf16>
    %cst_19 = arith.constant dense<0.000000e+00> : vector<8x128xf32>
    %34 = tpu.matmul %32, %33, %cst_19 {dimension_numbers = #tpu.dot_dimension_numbers<[1], [0], [0], [1], [0, 0, 1, 1], [], []>} : vector<8x48xbf16>, vector<48x128xbf16>, vector<8x128xf32> -> vector<8x128xf32>
    %c0_20 = arith.constant 0 : index
    %c0_21 = arith.constant 0 : index
    %35 = vector.load %arg7[%c0_20, %c0_21] : memref<1x128xf32, #tpu.memory_space<vmem>>, vector<1x128xf32>
    %36 = vector.broadcast %35 : vector<1x128xf32> to vector<8x128xf32>
    %37 = arith.addf %34, %36 : vector<8x128xf32>
    %c0_22 = arith.constant 0 : index
    %c0_23 = arith.constant 0 : index
    %38 = vector.load %arg9[%c0_22, %c0_23] : memref<8x128xf32, #tpu.memory_space<vmem>>, vector<8x128xf32>
    tpu.vector_store %arg9[%c0_22, %c0_23], %37 {strides = array<i32>} : memref<8x128xf32, #tpu.memory_space<vmem>>, vector<8x128xf32>,
    %39 = arith.mulf %37, %37 : vector<8x128xf32>
    %cst_24 = arith.constant dense<0.000000e+00> : vector<8xf32>
    %40 = vector.multi_reduction <add>, %39, %cst_24 [1] : vector<8x128xf32> to vector<8xf32>
    %41 = vector.shape_cast %40 : vector<8xf32> to vector<8x1xf32>
    %42 = arith.mulf %29, %29 : vector<8x128xf32>
    %cst_25 = arith.constant dense<0.000000e+00> : vector<8xf32>
    %43 = vector.multi_reduction <add>, %42, %cst_25 [1] : vector<8x128xf32> to vector<8xf32>
    %44 = vector.shape_cast %43 : vector<8xf32> to vector<8x1xf32>
    %cst_26 = arith.constant 1.000000e-24 : f32
    %45 = vector.broadcast %cst_26 : f32 to vector<8x1xf32>
    %46 = arith.maximumf %41, %45 : vector<8x1xf32>
    %47 = math.rsqrt %46 : vector<8x1xf32>
    %48 = vector.broadcast %47 : vector<8x1xf32> to vector<8x128xf32>
    %49 = arith.mulf %37, %48 : vector<8x128xf32>
    %cst_27 = arith.constant 1.000000e-24 : f32
    %50 = vector.broadcast %cst_27 : f32 to vector<8x1xf32>
    %51 = arith.maximumf %44, %50 : vector<8x1xf32>
    %52 = math.rsqrt %51 : vector<8x1xf32>
    %53 = vector.broadcast %52 : vector<8x1xf32> to vector<8x128xf32>
    %54 = arith.mulf %29, %53 : vector<8x128xf32>
    %55 = arith.truncf %49 : vector<8x128xf32> to vector<8x128xbf16>
    %56 = arith.truncf %54 : vector<8x128xf32> to vector<8x128xbf16>
    %cst_28 = arith.constant dense<0.000000e+00> : vector<8x8xf32>
    %57 = tpu.matmul %55, %56, %cst_28 {dimension_numbers = #tpu.dot_dimension_numbers<[1], [1], [0], [0], [0, 0, 1, 0], [], []>} : vector<8x128xbf16>, vector<8x128xbf16>, vector<8x8xf32> -> vector<8x8xf32>
    %c0_29 = arith.constant 0 : index
    %c0_30 = arith.constant 0 : index
    %58 = vector.load %arg10[%c0_29, %c0_30] : memref<8x8xf32, #tpu.memory_space<vmem>>, vector<8x8xf32>
    tpu.vector_store %arg10[%c0_29, %c0_30], %57 {strides = array<i32>} : memref<8x8xf32, #tpu.memory_space<vmem>>, vector<8x8xf32>,
    %59 = arith.extf %55 : vector<8x128xbf16> to vector<8x128xf32>
    %60 = arith.extf %56 : vector<8x128xbf16> to vector<8x128xf32>
    %61 = arith.mulf %59, %60 : vector<8x128xf32>
    %cst_31 = arith.constant dense<0.000000e+00> : vector<8xf32>
    %62 = vector.multi_reduction <add>, %61, %cst_31 [1] : vector<8x128xf32> to vector<8xf32>
    %63 = vector.shape_cast %62 : vector<8xf32> to vector<8x1xf32>
    %cst_32 = arith.constant dense<0xFF800000> : vector<8xf32>
    %64 = vector.multi_reduction <maximumf>, %57, %cst_32 [1] : vector<8x8xf32> to vector<8xf32>
    %65 = vector.shape_cast %64 : vector<8xf32> to vector<8x1xf32>
    %66 = vector.broadcast %65 : vector<8x1xf32> to vector<8x8xf32>
    %67 = arith.subf %57, %66 : vector<8x8xf32>
    %68 = math.exp %67 : vector<8x8xf32>
    %cst_33 = arith.constant dense<0.000000e+00> : vector<8xf32>
    %69 = vector.multi_reduction <add>, %68, %cst_33 [1] : vector<8x8xf32> to vector<8xf32>
    %70 = vector.shape_cast %69 : vector<8xf32> to vector<8x1xf32>
    %71 = math.log %70 : vector<8x1xf32>
    %72 = arith.addf %71, %65 : vector<8x1xf32>
    %cst_34 = arith.constant dense<0xFF800000> : vector<8xf32>
    %73 = vector.multi_reduction <maximumf>, %57, %cst_34 [0] : vector<8x8xf32> to vector<8xf32>
    %74 = vector.shape_cast %73 : vector<8xf32> to vector<1x8xf32>
    %75 = vector.broadcast %74 : vector<1x8xf32> to vector<8x8xf32>
    %76 = arith.subf %57, %75 : vector<8x8xf32>
    %77 = math.exp %76 : vector<8x8xf32>
    %cst_35 = arith.constant dense<0.000000e+00> : vector<8xf32>
    %78 = vector.multi_reduction <add>, %77, %cst_35 [0] : vector<8x8xf32> to vector<8xf32>
    %79 = vector.shape_cast %78 : vector<8xf32> to vector<1x8xf32>
    %80 = math.log %79 : vector<1x8xf32>
    %81 = arith.addf %80, %74 : vector<1x8xf32>
    %82 = arith.subf %72, %63 : vector<8x1xf32>
    %cst_36 = arith.constant dense<0.000000e+00> : vector<1xf32>
    %83 = vector.multi_reduction <add>, %82, %cst_36 [0] : vector<8x1xf32> to vector<1xf32>
    %84 = vector.shape_cast %83 : vector<1xf32> to vector<1x1xf32>
    %cst_37 = arith.constant dense<0.000000e+00> : vector<1xf32>
    %85 = vector.multi_reduction <add>, %81, %cst_37 [1] : vector<1x8xf32> to vector<1xf32>
    %86 = vector.shape_cast %85 : vector<1xf32> to vector<1x1xf32>
    %87 = arith.addf %84, %86 : vector<1x1xf32>
    %cst_38 = arith.constant dense<0.000000e+00> : vector<1xf32>
    %88 = vector.multi_reduction <add>, %63, %cst_38 [0] : vector<8x1xf32> to vector<1xf32>
    %89 = vector.shape_cast %88 : vector<1xf32> to vector<1x1xf32>
    %90 = arith.subf %87, %89 : vector<1x1xf32>
    %cst_39 = arith.constant 6.250000e-02 : f32
    %91 = vector.broadcast %cst_39 : f32 to vector<1x1xf32>
    %92 = arith.mulf %90, %91 : vector<1x1xf32>
    %93 = vector.extract %92[0, 0] : f32 from vector<1x1xf32>
    %c0_40 = arith.constant 0 : index
    %c0_41 = arith.constant 0 : index
    %94 = memref.load %arg11[%c0_40, %c0_41] : memref<1x1xf32, #tpu.memory_space<smem>>
    memref.store %93, %arg11[%c0_40, %c0_41] : memref<1x1xf32, #tpu.memory_space<smem>>
    return
  }
}

</mosaic_0001>

<llo_original>
// kernel: tpu_custom_call.1
$region0: #{tpu_custom_call.1}
  #allocation0 [shape = 'u32[]', space=smem, size = 0x4, offset = 0x4, fixed_abs, tag = 'smem constant byte address 0x4 - core index']
  #allocation1 [shape = 'u32[144,128]{1,0:T(1,128)}', space=vmem, size = 0x12000, scoped, tag = 'internal scratch']
  %s0 = inlined_call_operand.vmem [shape: s32[8,8], index: 0, kind: input, shape index: {}]
  %s1 = inlined_call_operand.hbm [shape: f32[8,8], index: 1, kind: input, shape index: {}]
  %s2 = inlined_call_operand.vmem [shape: bf16[64,32], index: 2, kind: input, shape index: {}]
  %s3 = inlined_call_operand.vmem [shape: bf16[32,128], index: 3, kind: input, shape index: {}]
  %s4 = inlined_call_operand.vmem [shape: f32[1,128], index: 4, kind: input, shape index: {}]
  %s5 = inlined_call_operand.vmem [shape: f32[8,48], index: 5, kind: input, shape index: {}]
  %s6 = inlined_call_operand.vmem [shape: bf16[48,128], index: 6, kind: input, shape index: {}]
  %s7 = inlined_call_operand.vmem [shape: f32[1,128], index: 7, kind: input, shape index: {}]
  %s8 = inlined_call_operand.hbm [shape: f32[8,128], index: 8, kind: output, shape index: {0}]
  %s9 = inlined_call_operand.hbm [shape: f32[8,128], index: 9, kind: output, shape index: {1}]
  %s10 = inlined_call_operand.hbm [shape: f32[8,8], index: 10, kind: output, shape index: {2}]
  %s11 = inlined_call_operand.hbm [shape: f32[1,1], index: 11, kind: output, shape index: {3}]
  %12 = xla_tuple %s8, %s9, %s10, %s11
  %s13 = sld [smem:[#allocation0]]
  $region70: #{tpu_custom_call.1} parent=0
    _
  %s15 = ssub.s32 1, %s13
  %s16 = scalar_select 0, %s15, %s13
  $region1: #{tpu_custom_call.1} parent=0
    #allocation2 [shape = 'u8[4096]{0}', space=vmem, size = 0x1000, scoped, tag = 'input window, operand 1, single buffered']
    #allocation3 [shape = 's32[1]{0}', space=sflag, size = 0x4, scoped, tag = 'scoped memory for tpu_custom_call.1']
    #allocation4 [shape = 's32[1]{0}', space=sflag, size = 0x4, scoped, tag = 'scoped memory for tpu_custom_call.1']
    #allocation5 [shape = 's32[1]{0}', space=sflag, size = 0x4, scoped, tag = 'scoped memory for tpu_custom_call.1']
    #allocation6 [shape = 'u8[4096]{0}', space=vmem, size = 0x1000, scoped, tag = 'output window, operand 0, single buffered']
    #allocation7 [shape = 'u8[4096]{0}', space=vmem, size = 0x1000, scoped, tag = 'output window, operand 1, single buffered']
    #allocation8 [shape = 's32[1]{0}', space=sflag, size = 0x4, scoped, tag = 'scoped memory for tpu_custom_call.1']
    #allocation9 [shape = 'u8[4096]{0}', space=vmem, size = 0x1000, scoped, tag = 'output window, operand 2, single buffered']
    #allocation10 [shape = 'u8[512]{0}', space=smem, size = 0x200, scoped, tag = 'output window, operand 3, single buffered']
    %17 = vsyncpa [#allocation3], 0
    %18 = vsyncpa [#allocation4], 0
    %19 = vsyncpa [#allocation8], 0
    %20 = vsyncpa [#allocation5], 0
    // Predicated region
    $region2: #{tpu_custom_call.1} parent=1 // pred_check
      _
    $region3: #{tpu_custom_call.1} parent=1 // pred_check_branch
      %22 = sbr.rel (0) target = $region5
    $region4: #{tpu_custom_call.1} parent=1 // pred_region
      _
    $region5: #{tpu_custom_call.1} parent=1 // pred_fallthru
      _
    // Predicated region
    $region6: #{tpu_custom_call.1} parent=1 // pred_check
      _
    $region7: #{tpu_custom_call.1} parent=1 // pred_check_branch
      %24 = sbr.rel (0) target = $region9
    $region8: #{tpu_custom_call.1} parent=1 // pred_region
      %s26 = ssub.s32 128, 128
      %27 = vsyncadd [#allocation3], %s26
      %s29 = sshll.u32 [#allocation2], 4
      %s30 = int_to_ptr.vmem [resolvable:$true] %s29
      %32 = dma.hbm_to_vmem [thread:$0]  %s1, 128, %s30, [#allocation3]
    $region9: #{tpu_custom_call.1} parent=1 // pred_fallthru
      _
    // Predicated region
    $region10: #{tpu_custom_call.1} parent=1 // pred_check
      _
    $region11: #{tpu_custom_call.1} parent=1 // pred_check_branch
      %34 = sbr.rel (0) target = $region13
    $region12: #{tpu_custom_call.1} parent=1 // pred_region
      _
    $region13: #{tpu_custom_call.1} parent=1 // pred_fallthru
      _
    // Predicated region
    $region14: #{tpu_custom_call.1} parent=1 // pred_check
      _
    $region15: #{tpu_custom_call.1} parent=1 // pred_check_branch
      %36 = sbr.rel (0) target = $region17
    $region16: #{tpu_custom_call.1} parent=1 // pred_region
      _
    $region17: #{tpu_custom_call.1} parent=1 // pred_fallthru
      _
    // Predicated region
    $region18: #{tpu_custom_call.1} parent=1 // pred_check
      _
    $region19: #{tpu_custom_call.1} parent=1 // pred_check_branch
      %38 = sbr.rel (0) target = $region21
    $region20: #{tpu_custom_call.1} parent=1 // pred_region
      _
    $region21: #{tpu_custom_call.1} parent=1 // pred_fallthru
      _
    // Predicated region
    $region22: #{tpu_custom_call.1} parent=1 // pred_check
      _
    $region23: #{tpu_custom_call.1} parent=1 // pred_check_branch
      %40 = sbr.rel (0) target = $region25
    $region24: #{tpu_custom_call.1} parent=1 // pred_region
      _
    $region25: #{tpu_custom_call.1} parent=1 // pred_fallthru
      _
    // Predicated region
    $region26: #{tpu_custom_call.1} parent=1 // pred_check
      _
    $region27: #{tpu_custom_call.1} parent=1 // pred_check_branch
      %42 = sbr.rel (0) target = $region29
    $region28: #{tpu_custom_call.1} parent=1 // pred_region
      _
    $region29: #{tpu_custom_call.1} parent=1 // pred_fallthru
      _
    // Predicated region
    $region30: #{tpu_custom_call.1} parent=1 // pred_check
      _
    $region31: #{tpu_custom_call.1} parent=1 // pred_check_branch
      %44 = sbr.rel (0) target = $region33
    $region32: #{tpu_custom_call.1} parent=1 // pred_region
      _
    $region33: #{tpu_custom_call.1} parent=1 // pred_fallthru
      _
    // Predicated region
    $region34: #{tpu_custom_call.1} parent=1 // pred_check
      _
    $region35: #{tpu_custom_call.1} parent=1 // pred_check_branch
      %46 = sbr.rel (0) target = $region37
    $region36: #{tpu_custom_call.1} parent=1 // pred_region
      %47 = dma.done [#allocation3], 128
    $region37: #{tpu_custom_call.1} parent=1 // pred_fallthru
      _
    %v49 = vld [vmem:[%s0] sm:$0xff]
    %v50 = vld [vmem:[#allocation2] sm:$0xff]
    %v51 = vlaneseq
    %v52 = vand.u32 %v51, 127
    %v53 = vlaneseq
    %v54 = vshrl.u32 %v53, 7
    %v55 = vsub.s32 0, %v54
    %v56 = vrot.slane %v49, %v55
    %58 = vbcast.lane.b32.xlu0 %v56, 256
    %v59 = vpop.permute.xlu0 %58
    %v60 = vlaneseq
    %v61 = vshrl.u32 %v60, 7
    %v62 = vsub.s32 1, %v61
    %v63 = vrot.slane %v49, %v62
    %65 = vbcast.lane.b32.xlu0 %v63, 256
    %v66 = vpop.permute.xlu0 %65
    %v67 = vlaneseq
    %v68 = vshrl.u32 %v67, 7
    %v69 = vsub.s32 2, %v68
    %v70 = vrot.slane %v49, %v69
    %72 = vbcast.lane.b32.xlu0 %v70, 256
    %v73 = vpop.permute.xlu0 %72
    %v74 = vlaneseq
    %v75 = vshrl.u32 %v74, 7
    %v76 = vsub.s32 3, %v75
    %v77 = vrot.slane %v49, %v76
    %79 = vbcast.lane.b32.xlu0 %v77, 256
    %v80 = vpop.permute.xlu0 %79
    %v81 = vlaneseq
    %v82 = vshrl.u32 %v81, 7
    %v83 = vsub.s32 4, %v82
    %v84 = vrot.slane %v49, %v83
    %86 = vbcast.lane.b32.xlu0 %v84, 256
    %v87 = vpop.permute.xlu0 %86
    %v88 = vlaneseq
    %v89 = vshrl.u32 %v88, 7
    %v90 = vsub.s32 5, %v89
    %v91 = vrot.slane %v49, %v90
    %93 = vbcast.lane.b32.xlu0 %v91, 256
    %v94 = vpop.permute.xlu0 %93
    %v95 = vlaneseq
    %v96 = vshrl.u32 %v95, 7
    %v97 = vsub.s32 6, %v96
    %v98 = vrot.slane %v49, %v97
    %100 = vbcast.lane.b32.xlu0 %v98, 256
    %v101 = vpop.permute.xlu0 %100
    %v102 = vlaneseq
    %v103 = vshrl.u32 %v102, 7
    %v104 = vsub.s32 7, %v103
    %v105 = vrot.slane %v49, %v104
    %107 = vbcast.lane.b32.xlu0 %v105, 256
    %v108 = vpop.permute.xlu0 %107
    %vm109 = vcmp.eq.s32.totalorder %v59, %v52
    %vm110 = vcmp.eq.s32.totalorder %v66, %v52
    %vm111 = vcmp.eq.s32.totalorder %v73, %v52
    %vm112 = vcmp.eq.s32.totalorder %v80, %v52
    %vm113 = vcmp.eq.s32.totalorder %v87, %v52
    %vm114 = vcmp.eq.s32.totalorder %v94, %v52
    %vm115 = vcmp.eq.s32.totalorder %v101, %v52
    %vm116 = vcmp.eq.s32.totalorder %v108, %v52
    %v117 = vsel %vm109, 1, 0
    %v118 = vsel %vm110, 1, 0
    %v119 = vsel %vm111, 1, 0
    %v120 = vsel %vm112, 1, 0
    %v121 = vsel %vm113, 1, 0
    %v122 = vsel %vm114, 1, 0
    %v123 = vsel %vm115, 1, 0
    %v124 = vsel %vm116, 1, 0
    %v125 = vcvt.s32.f32 %v117
    %v126 = vcvt.s32.f32 %v118
    %v127 = vcvt.s32.f32 %v119
    %v128 = vcvt.s32.f32 %v120
    %v129 = vcvt.s32.f32 %v121
    %v130 = vcvt.s32.f32 %v122
    %v131 = vcvt.s32.f32 %v123
    %v132 = vcvt.s32.f32 %v124
    %v133 = vlaneseq
    %v134 = vshrl.u32 %v133, 7
    %v135 = vsub.s32 0, %v134
    %v136 = vrot.slane %v50, %v135
    %138 = vbcast.lane.b32.xlu0 %v136, 256
    %v139 = vpop.permute.xlu0 %138
    %v140 = vlaneseq
    %v141 = vshrl.u32 %v140, 7
    %v142 = vsub.s32 1, %v141
    %v143 = vrot.slane %v50, %v142
    %145 = vbcast.lane.b32.xlu0 %v143, 256
    %v146 = vpop.permute.xlu0 %145
    %v147 = vlaneseq
    %v148 = vshrl.u32 %v147, 7
    %v149 = vsub.s32 2, %v148
    %v150 = vrot.slane %v50, %v149
    %152 = vbcast.lane.b32.xlu0 %v150, 256
    %v153 = vpop.permute.xlu0 %152
    %v154 = vlaneseq
    %v155 = vshrl.u32 %v154, 7
    %v156 = vsub.s32 3, %v155
    %v157 = vrot.slane %v50, %v156
    %159 = vbcast.lane.b32.xlu0 %v157, 256
    %v160 = vpop.permute.xlu0 %159
    %v161 = vlaneseq
    %v162 = vshrl.u32 %v161, 7
    %v163 = vsub.s32 4, %v162
    %v164 = vrot.slane %v50, %v163
    %166 = vbcast.lane.b32.xlu0 %v164, 256
    %v167 = vpop.permute.xlu0 %166
    %v168 = vlaneseq
    %v169 = vshrl.u32 %v168, 7
    %v170 = vsub.s32 5, %v169
    %v171 = vrot.slane %v50, %v170
    %173 = vbcast.lane.b32.xlu0 %v171, 256
    %v174 = vpop.permute.xlu0 %173
    %v175 = vlaneseq
    %v176 = vshrl.u32 %v175, 7
    %v177 = vsub.s32 6, %v176
    %v178 = vrot.slane %v50, %v177
    %180 = vbcast.lane.b32.xlu0 %v178, 256
    %v181 = vpop.permute.xlu0 %180
    %v182 = vlaneseq
    %v183 = vshrl.u32 %v182, 7
    %v184 = vsub.s32 7, %v183
    %v185 = vrot.slane %v50, %v184
    %187 = vbcast.lane.b32.xlu0 %v185, 256
    %v188 = vpop.permute.xlu0 %187
    %v189 = vmul.f32 %v125, %v139
    %v190 = vmul.f32 %v126, %v146
    %v191 = vmul.f32 %v127, %v153
    %v192 = vmul.f32 %v128, %v160
    %v193 = vmul.f32 %v129, %v167
    %v194 = vmul.f32 %v130, %v174
    %v195 = vmul.f32 %v131, %v181
    %v196 = vmul.f32 %v132, %v188
    %vm197 = vcmask 523264
    %v198 = vsel %vm197, %v189, 0.0
    %v199 = vrot.slane %v198, 4
    %v200 = vadd.f32 %v198, %v199
    %v201 = vrot.slane %v200, 2
    %v202 = vadd.f32 %v200, %v201
    %v203 = vrot.slane %v202, 1
    %v204 = vadd.f32 %v202, %v203
    %v205 = vsel %vm197, %v190, 0.0
    %v206 = vrot.slane %v205, 4
    %v207 = vadd.f32 %v205, %v206
    %v208 = vrot.slane %v207, 2
    %v209 = vadd.f32 %v207, %v208
    %v210 = vrot.slane %v209, 1
    %v211 = vadd.f32 %v209, %v210
    %v212 = vsel %vm197, %v191, 0.0
    %v213 = vrot.slane %v212, 4
    %v214 = vadd.f32 %v212, %v213
    %v215 = vrot.slane %v214, 2
    %v216 = vadd.f32 %v214, %v215
    %v217 = vrot.slane %v216, 1
    %v218 = vadd.f32 %v216, %v217
    %v219 = vsel %vm197, %v192, 0.0
    %v220 = vrot.slane %v219, 4
    %v221 = vadd.f32 %v219, %v220
    %v222 = vrot.slane %v221, 2
    %v223 = vadd.f32 %v221, %v222
    %v224 = vrot.slane %v223, 1
    %v225 = vadd.f32 %v223, %v224
    %v226 = vsel %vm197, %v193, 0.0
    %v227 = vrot.slane %v226, 4
    %v228 = vadd.f32 %v226, %v227
    %v229 = vrot.slane %v228, 2
    %v230 = vadd.f32 %v228, %v229
    %v231 = vrot.slane %v230, 1
    %v232 = vadd.f32 %v230, %v231
    %v233 = vsel %vm197, %v194, 0.0
    %v234 = vrot.slane %v233, 4
    %v235 = vadd.f32 %v233, %v234
    %v236 = vrot.slane %v235, 2
    %v237 = vadd.f32 %v235, %v236
    %v238 = vrot.slane %v237, 1
    %v239 = vadd.f32 %v237, %v238
    %v240 = vsel %vm197, %v195, 0.0
    %v241 = vrot.slane %v240, 4
    %v242 = vadd.f32 %v240, %v241
    %v243 = vrot.slane %v242, 2
    %v244 = vadd.f32 %v242, %v243
    %v245 = vrot.slane %v244, 1
    %v246 = vadd.f32 %v244, %v245
    %v247 = vsel %vm197, %v196, 0.0
    %v248 = vrot.slane %v247, 4
    %v249 = vadd.f32 %v247, %v248
    %v250 = vrot.slane %v249, 2
    %v251 = vadd.f32 %v249, %v250
    %v252 = vrot.slane %v251, 1
    %v253 = vadd.f32 %v251, %v252
    %vm254 = vcmask 64512
    %v255 = vsel %vm254, %v50, 0.0
    %256 = vadd.xlane.f32.xlu0 %v255
    %v257 = vpop.xlane.xlu0 %256
    %v258 = vmax.f32 %v257, 1.0
    %v259 = vpack.c.bf16 %v204, %v204
    %v260 = vpack.c.bf16 %v211, %v211
    %v261 = vpack.c.bf16 %v218, %v218
    %v262 = vpack.c.bf16 %v225, %v225
    %v263 = vpack.c.bf16 %v232, %v232
    %v264 = vpack.c.bf16 %v239, %v239
    %v265 = vpack.c.bf16 %v246, %v246
    %v266 = vpack.c.bf16 %v253, %v253
    %v267 = vld [vmem:[%s2] sm:$0xf]
    %v268 = vld [vmem:[%s2 + $0x4] sm:$0xf]
    %v269 = vld [vmem:[%s2 + $0x8] sm:$0xf]
    %v270 = vld [vmem:[%s2 + $0xc] sm:$0xf]
    %v271 = vld [vmem:[%s2 + $0x10] sm:$0xf]
    %v272 = vld [vmem:[%s2 + $0x14] sm:$0xf]
    %v273 = vld [vmem:[%s2 + $0x18] sm:$0xf]
    %v274 = vld [vmem:[%s2 + $0x1c] sm:$0xf]
    %v283 = vunpack.c.l.b16 %v259
    %v284 = vunpack.c.l.b16 %v260
    %v285 = vunpack.c.l.b16 %v261
    %v286 = vunpack.c.l.b16 %v262
    %v287 = vunpack.c.l.b16 %v263
    %v288 = vunpack.c.l.b16 %v264
    %v289 = vunpack.c.l.b16 %v265
    %v290 = vunpack.c.l.b16 %v266
    %vm291 = vcmask 1041409
    %v292 = vsel %vm291, %v284, %v283
    %vm293 = vcmask 1042434
    %v294 = vsel %vm293, %v285, %v292
    %vm295 = vcmask 1043459
    %v296 = vsel %vm295, %v286, %v294
    %vm297 = vcmask 1044484
    %v298 = vsel %vm297, %v287, %v296
    %vm299 = vcmask 1045509
    %v300 = vsel %vm299, %v288, %v298
    %vm301 = vcmask 1046534
    %v302 = vsel %vm301, %v289, %v300
    %vm303 = vcmask 1047559
    %v304 = vsel %vm303, %v290, %v302
    %v305 = vpack.c.b16 %v304, %v304
    %v314 = vunpack.c.l.b16 %v267
    %v315 = vunpack.c.l.b16 %v268
    %v316 = vunpack.c.l.b16 %v269
    %v317 = vunpack.c.l.b16 %v270
    %v318 = vunpack.c.l.b16 %v271
    %v319 = vunpack.c.l.b16 %v272
    %v320 = vunpack.c.l.b16 %v273
    %v321 = vunpack.c.l.b16 %v274
    %v322 = vpack.c.b16 %v315, %v314
    %v323 = vpack.c.b16 %v317, %v316
    %v324 = vpack.c.b16 %v319, %v318
    %v325 = vpack.c.b16 %v321, %v320
    %v331 = vsel %vm197, %v305, 0
    %333 = vmatprep.subr.bf16.mxu0 0
    %334 = vmatpush1.bf16.msra.mxu0 %v322
    %335 = vmatprep.subr.bf16.mxu0 0
    %336 = vmatpush1.bf16.msra.mxu0 %v323
    %337 = vmatprep.subr.bf16.mxu0 0
    %338 = vmatpush1.bf16.msra.mxu0 %v324
    %339 = vmatprep.subr.bf16.mxu0 0
    %340 = vmatpush1.bf16.msra.mxu0 %v325
    %341 = vmatprep.subr.bf16.mxu0 0
    %342 = vmatpush1.bf16.msra.mxu0 0
    %343 = vmatprep.subr.bf16.mxu0 0
    %344 = vmatpush1.bf16.msra.mxu0 0
    %345 = vmatprep.subr.bf16.mxu0 0
    %346 = vmatpush1.bf16.msra.mxu0 0
    %347 = vmatprep.subr.bf16.mxu0 0
    %348 = vmatpush1.bf16.msra.mxu0 0
    %349 = vmatprep.subr.bf16.mxu0 0
    %350 = vmatpush1.bf16.msra.mxu0 0
    %351 = vmatprep.subr.bf16.mxu0 0
    %352 = vmatpush1.bf16.msra.mxu0 0
    %353 = vmatprep.subr.bf16.mxu0 0
    %354 = vmatpush1.bf16.msra.mxu0 0
    %355 = vmatprep.subr.bf16.mxu0 0
    %356 = vmatpush1.bf16.msra.mxu0 0
    %357 = vmatprep.subr.bf16.mxu0 0
    %358 = vmatpush1.bf16.msra.mxu0 0
    %359 = vmatprep.subr.bf16.mxu0 0
    %360 = vmatpush1.bf16.msra.mxu0 0
    %361 = vmatprep.subr.bf16.mxu0 0
    %362 = vmatpush1.bf16.msra.mxu0 0
    %363 = vmatprep.subr.bf16.mxu0 0
    %364 = vmatpush1.bf16.msra.mxu0 0
    %365 = vmatprep.mubr.bf16.mxu0 0
    %366 = vmatmul.mubr.bf16.gmra.mrb[0].mxu0 %v331
    %v367 = vpop.f32.mrb[0].mxu0
    %v368 = vadd.f32 0.0, %v367
    %v369 = vpop.f32.mrb[0].mxu0
    %v370 = vpop.f32.mrb[0].mxu0
    %v371 = vpop.f32.mrb[0].mxu0
    %372 = vdwg.mxu0
    %v373 = vrcp.pop %v258
    %v374 = vmul.f32 %v368, %v373
    %v375 = vpack.c.bf16 %v374, %v374
    %v376 = vld [vmem:[%s3] sm:$0xf]
    %v377 = vld [vmem:[%s3 + $0x4] sm:$0xf]
    %v378 = vld [vmem:[%s3 + $0x8] sm:$0xf]
    %v379 = vld [vmem:[%s3 + $0xc] sm:$0xf]
    %v380 = vld [vmem:[%s4] sm:$0x1]
    %v382 = vlaneseq
    %v383 = vshrl.u32 %v382, 7
    %v384 = vsub.s32 0, %v383
    %v385 = vrot.slane %v380, %v384
    %v391 = vunpack.c.l.b16 %v376
    %v392 = vunpack.c.l.b16 %v377
    %v393 = vunpack.c.l.b16 %v378
    %v394 = vunpack.c.l.b16 %v379
    %v395 = vpack.c.b16 %v392, %v391
    %v396 = vpack.c.b16 %v394, %v393
    %vm399 = vcmask 261120
    %v401 = vsel %vm399, %v375, 0
    %403 = vmatprep.subr.bf16.mxu0 0
    %404 = vmatpush1.bf16.msra.mxu0 %v395
    %405 = vmatprep.subr.bf16.mxu0 0
    %406 = vmatpush1.bf16.msra.mxu0 %v396
    %407 = vmatprep.subr.bf16.mxu0 0
    %408 = vmatpush1.bf16.msra.mxu0 0
    %409 = vmatprep.subr.bf16.mxu0 0
    %410 = vmatpush1.bf16.msra.mxu0 0
    %411 = vmatprep.subr.bf16.mxu0 0
    %412 = vmatpush1.bf16.msra.mxu0 0
    %413 = vmatprep.subr.bf16.mxu0 0
    %414 = vmatpush1.bf16.msra.mxu0 0
    %415 = vmatprep.subr.bf16.mxu0 0
    %416 = vmatpush1.bf16.msra.mxu0 0
    %417 = vmatprep.subr.bf16.mxu0 0
    %418 = vmatpush1.bf16.msra.mxu0 0
    %419 = vmatprep.subr.bf16.mxu0 0
    %420 = vmatpush1.bf16.msra.mxu0 0
    %421 = vmatprep.subr.bf16.mxu0 0
    %422 = vmatpush1.bf16.msra.mxu0 0
    %423 = vmatprep.subr.bf16.mxu0 0
    %424 = vmatpush1.bf16.msra.mxu0 0
    %425 = vmatprep.subr.bf16.mxu0 0
    %426 = vmatpush1.bf16.msra.mxu0 0
    %427 = vmatprep.subr.bf16.mxu0 0
    %428 = vmatpush1.bf16.msra.mxu0 0
    %429 = vmatprep.subr.bf16.mxu0 0
    %430 = vmatpush1.bf16.msra.mxu0 0
    %431 = vmatprep.subr.bf16.mxu0 0
    %432 = vmatpush1.bf16.msra.mxu0 0
    %433 = vmatprep.subr.bf16.mxu0 0
    %434 = vmatpush1.bf16.msra.mxu0 0
    %435 = vmatprep.mubr.bf16.mxu0 0
    %436 = vmatmul.mubr.bf16.gmra.mrb[0].mxu0 %v401
    %v437 = vpop.f32.mrb[0].mxu0
    %v438 = vadd.f32 %v385, %v437
    %v439 = vpop.f32.mrb[0].mxu0
    %v440 = vpop.f32.mrb[0].mxu0
    %v441 = vpop.f32.mrb[0].mxu0
    %442 = vdwg.mxu0
    %443 = vst [vmem:[#allocation6] sm:$0xff] %v438
    %v444 = vld [vmem:[%s5] sm:$0xff]
    %v445 = vpack.c.bf16 %v444, %v444
    %v446 = vld [vmem:[%s6] sm:$0xf]
    %v447 = vld [vmem:[%s6 + $0x4] sm:$0xf]
    %v448 = vld [vmem:[%s6 + $0x8] sm:$0xf]
    %v449 = vld [vmem:[%s6 + $0xc] sm:$0xf]
    %v450 = vld [vmem:[%s6 + $0x10] sm:$0xf]
    %v451 = vld [vmem:[%s6 + $0x14] sm:$0xf]
    %v452 = vld [vmem:[%s7] sm:$0x1]
    %v454 = vlaneseq
    %v455 = vshrl.u32 %v454, 7
    %v456 = vsub.s32 0, %v455
    %v457 = vrot.slane %v452, %v456
    %v465 = vunpack.c.l.b16 %v446
    %v466 = vunpack.c.l.b16 %v447
    %v467 = vunpack.c.l.b16 %v448
    %v468 = vunpack.c.l.b16 %v449
    %v469 = vunpack.c.l.b16 %v450
    %v470 = vunpack.c.l.b16 %v451
    %v471 = vpack.c.b16 %v466, %v465
    %v472 = vpack.c.b16 %v468, %v467
    %v473 = vpack.c.b16 %v470, %v469
    %vm477 = vcmask 392192
    %v479 = vsel %vm477, %v445, 0
    %481 = vmatprep.subr.bf16.mxu0 0
    %482 = vmatpush1.bf16.msra.mxu0 %v471
    %483 = vmatprep.subr.bf16.mxu0 0
    %484 = vmatpush1.bf16.msra.mxu0 %v472
    %485 = vmatprep.subr.bf16.mxu0 0
    %486 = vmatpush1.bf16.msra.mxu0 %v473
    %487 = vmatprep.subr.bf16.mxu0 0
    %488 = vmatpush1.bf16.msra.mxu0 0
    %489 = vmatprep.subr.bf16.mxu0 0
    %490 = vmatpush1.bf16.msra.mxu0 0
    %491 = vmatprep.subr.bf16.mxu0 0
    %492 = vmatpush1.bf16.msra.mxu0 0
    %493 = vmatprep.subr.bf16.mxu0 0
    %494 = vmatpush1.bf16.msra.mxu0 0
    %495 = vmatprep.subr.bf16.mxu0 0
    %496 = vmatpush1.bf16.msra.mxu0 0
    %497 = vmatprep.subr.bf16.mxu0 0
    %498 = vmatpush1.bf16.msra.mxu0 0
    %499 = vmatprep.subr.bf16.mxu0 0
    %500 = vmatpush1.bf16.msra.mxu0 0
    %501 = vmatprep.subr.bf16.mxu0 0
    %502 = vmatpush1.bf16.msra.mxu0 0
    %503 = vmatprep.subr.bf16.mxu0 0
    %504 = vmatpush1.bf16.msra.mxu0 0
    %505 = vmatprep.subr.bf16.mxu0 0
    %506 = vmatpush1.bf16.msra.mxu0 0
    %507 = vmatprep.subr.bf16.mxu0 0
    %508 = vmatpush1.bf16.msra.mxu0 0
    %509 = vmatprep.subr.bf16.mxu0 0
    %510 = vmatpush1.bf16.msra.mxu0 0
    %511 = vmatprep.subr.bf16.mxu0 0
    %512 = vmatpush1.bf16.msra.mxu0 0
    %513 = vmatprep.mubr.bf16.mxu0 0
    %514 = vmatmul.mubr.bf16.gmra.mrb[0].mxu0 %v479
    %v515 = vpop.f32.mrb[0].mxu0
    %v516 = vadd.f32 %v457, %v515
    %v517 = vpop.f32.mrb[0].mxu0
    %v518 = vpop.f32.mrb[0].mxu0
    %v519 = vpop.f32.mrb[0].mxu0
    %520 = vdwg.mxu0
    %521 = vst [vmem:[#allocation7] sm:$0xff] %v516
    %v522 = vmul.f32 %v516, %v516
    %523 = vadd.xlane.f32.xlu0 %v522
    %v524 = vpop.xlane.xlu0 %523
    %v525 = vmul.f32 %v438, %v438
    %526 = vadd.xlane.f32.xlu0 %v525
    %v527 = vpop.xlane.xlu0 %526
    %v528 = vmax.f32 %v524, 1e-24
    %v529 = vrsqrt.pop %v528
    %v530 = vmul.f32 %v516, %v529
    %v531 = vmax.f32 %v527, 1e-24
    %v532 = vrsqrt.pop %v531
    %v533 = vmul.f32 %v438, %v532
    %v534 = vpack.c.bf16 %v530, %v530
    %v535 = vpack.c.bf16 %v533, %v533
    %536 = vmatprep.subr.bf16.mxu0 0
    %537 = vmatpush1.bf16.xpose.msra.mxu0 %v535
    %538 = vmatprep.subr.bf16.mxu0 0
    %539 = vmatpush1.bf16.xpose.msra.mxu0 0
    %540 = vmatprep.subr.bf16.mxu0 0
    %541 = vmatpush1.bf16.xpose.msra.mxu0 0
    %542 = vmatprep.subr.bf16.mxu0 0
    %543 = vmatpush1.bf16.xpose.msra.mxu0 0
    %544 = vmatprep.subr.bf16.mxu0 0
    %545 = vmatpush1.bf16.xpose.msra.mxu0 0
    %546 = vmatprep.subr.bf16.mxu0 0
    %547 = vmatpush1.bf16.xpose.msra.mxu0 0
    %548 = vmatprep.subr.bf16.mxu0 0
    %549 = vmatpush1.bf16.xpose.msra.mxu0 0
    %550 = vmatprep.subr.bf16.mxu0 0
    %551 = vmatpush1.bf16.xpose.msra.mxu0 0
    %552 = vmatprep.subr.bf16.mxu0 0
    %553 = vmatpush1.bf16.xpose.msra.mxu0 0
    %554 = vmatprep.subr.bf16.mxu0 0
    %555 = vmatpush1.bf16.xpose.msra.mxu0 0
    %556 = vmatprep.subr.bf16.mxu0 0
    %557 = vmatpush1.bf16.xpose.msra.mxu0 0
    %558 = vmatprep.subr.bf16.mxu0 0
    %559 = vmatpush1.bf16.xpose.msra.mxu0 0
    %560 = vmatprep.subr.bf16.mxu0 0
    %561 = vmatpush1.bf16.xpose.msra.mxu0 0
    %562 = vmatprep.subr.bf16.mxu0 0
    %563 = vmatpush1.bf16.xpose.msra.mxu0 0
    %564 = vmatprep.subr.bf16.mxu0 0
    %565 = vmatpush1.bf16.xpose.msra.mxu0 0
    %566 = vmatprep.subr.bf16.mxu0 0
    %567 = vmatpush1.bf16.xpose.msra.mxu0 0
    %568 = vmatprep.mubr.bf16.mxu0 0
    %569 = vmatmul.mubr.bf16.gmra.mrb[0].mxu0 %v534
    %v570 = vpop.f32.mrb[0].mxu0
    %v571 = vadd.f32 0.0, %v570
    %v572 = vpop.f32.mrb[0].mxu0
    %v573 = vpop.f32.mrb[0].mxu0
    %v574 = vpop.f32.mrb[0].mxu0
    %575 = vdwg.mxu0
    %576 = vst.msk [vmem:[#allocation9] sm:$0xff] %vm254, %v571
    %v577 = vunpack.c.l.bf16 %v534
    %v578 = vunpack.c.l.bf16 %v535
    %v579 = vmul.f32 %v577, %v578
    %580 = vadd.xlane.f32.xlu0 %v579
    %v581 = vpop.xlane.xlu0 %580
    %v582 = vsel %vm254, %v571, -inf
    %583 = vmax.xlane.f32.xlu0 %v582
    %v584 = vpop.xlane.xlu0 %583
    %v585 = vsub.f32 %v571, %v584
    %v586 = vmul.f32 %v585, 1.442695
    %v587 = vpow.pop %v586
    %v588 = vsel %vm254, %v587, 0.0
    %589 = vadd.xlane.f32.xlu0 %v588
    %v590 = vpop.xlane.xlu0 %589
    %v591 = vlog2.pop %v590
    %v592 = vmul.f32 %v591, 0.6931472
    %v593 = vadd.f32 %v592, %v584
    %v594 = vrot.slane %v582, 4
    %v595 = vmax.f32 %v582, %v594
    %v596 = vrot.slane %v595, 2
    %v597 = vmax.f32 %v595, %v596
    %v598 = vrot.slane %v597, 1
    %v599 = vmax.f32 %v597, %v598
    %v600 = vsub.f32 %v571, %v599
    %v601 = vmul.f32 %v600, 1.442695
    %v602 = vpow.pop %v601
    %v603 = vsel %vm254, %v602, 0.0
    %v604 = vrot.slane %v603, 4
    %v605 = vadd.f32 %v603, %v604
    %v606 = vrot.slane %v605, 2
    %v607 = vadd.f32 %v605, %v606
    %v608 = vrot.slane %v607, 1
    %v609 = vadd.f32 %v607, %v608
    %v610 = vlog2.pop %v609
    %v611 = vmul.f32 %v610, 0.6931472
    %v612 = vadd.f32 %v611, %v599
    %v613 = vsub.f32 %v593, %v581
    %v614 = vrot.slane %v613, 4
    %v615 = vadd.f32 %v613, %v614
    %v616 = vrot.slane %v615, 2
    %v617 = vadd.f32 %v615, %v616
    %v618 = vrot.slane %v617, 1
    %v619 = vadd.f32 %v617, %v618
    %v620 = vsel %vm254, %v612, 0.0
    %621 = vadd.xlane.f32.xlu0 %v620
    %v622 = vpop.xlane.xlu0 %621
    %v623 = vadd.f32 %v619, %v622
    %v624 = vrot.slane %v581, 4
    %v625 = vadd.f32 %v581, %v624
    %v626 = vrot.slane %v625, 2
    %v627 = vadd.f32 %v625, %v626
    %v628 = vrot.slane %v627, 1
    %v629 = vadd.f32 %v627, %v628
    %v630 = vsub.f32 %v623, %v629
    %v631 = vmul.f32 %v630, 0.0625
    %s632 = vtos %v631
    %s633 = scalar_lea.smem [#allocation10], 0
    %634 = sst [smem:[%s633]] %s632
    // Predicated region
    $region38: #{tpu_custom_call.1} parent=1 // pred_check
      _
    $region39: #{tpu_custom_call.1} parent=1 // pred_check_branch
      %636 = sbr.rel (0) target = $region41
    $region40: #{tpu_custom_call.1} parent=1 // pred_region
      %s638 = ssub.s32 128, 128
      %639 = vsyncadd [#allocation4], %s638
      %s641 = sshll.u32 [#allocation6], 4
      %s642 = int_to_ptr.vmem [resolvable:$true] %s641
      %644 = dma.vmem_to_hbm [thread:$0]  %s642, 128, %s8, [#allocation4]
    $region41: #{tpu_custom_call.1} parent=1 // pred_fallthru
      _
    // Predicated region
    $region42: #{tpu_custom_call.1} parent=1 // pred_check
      _
    $region43: #{tpu_custom_call.1} parent=1 // pred_check_branch
      %646 = sbr.rel (0) target = $region45
    $region44: #{tpu_custom_call.1} parent=1 // pred_region
      %s648 = ssub.s32 128, 128
      %649 = vsyncadd [#allocation8], %s648
      %s651 = sshll.u32 [#allocation7], 4
      %s652 = int_to_ptr.vmem [resolvable:$true] %s651
      %654 = dma.vmem_to_hbm [thread:$0]  %s652, 128, %s9, [#allocation8]
    $region45: #{tpu_custom_call.1} parent=1 // pred_fallthru
      _
    // Predicated region
    $region46: #{tpu_custom_call.1} parent=1 // pred_check
      _
    $region47: #{tpu_custom_call.1} parent=1 // pred_check_branch
      %656 = sbr.rel (0) target = $region49
    $region48: #{tpu_custom_call.1} parent=1 // pred_region
      %s658 = ssub.s32 128, 128
      %659 = vsyncadd [#allocation8], %s658
      %s661 = sshll.u32 [#allocation9], 4
      %s662 = int_to_ptr.vmem [resolvable:$true] %s661
      %664 = dma.vmem_to_hbm [thread:$0]  %s662, 128, %s10, [#allocation8]
    $region49: #{tpu_custom_call.1} parent=1 // pred_fallthru
      _
    // Predicated region
    $region50: #{tpu_custom_call.1} parent=1 // pred_check
      _
    $region51: #{tpu_custom_call.1} parent=1 // pred_check_branch
      %666 = sbr.rel (0) target = $region53
    $region52: #{tpu_custom_call.1} parent=1 // pred_region
      %s668 = ssub.s32 16, 16
      %669 = vsyncadd [#allocation5], %s668
      %672 = dma.smem_to_hbm [#allocation10], 16, %s11, [#allocation5]
    $region53: #{tpu_custom_call.1} parent=1 // pred_fallthru
      _
    // Predicated region
    $region54: #{tpu_custom_call.1} parent=1 // pred_check
      _
    $region55: #{tpu_custom_call.1} parent=1 // pred_check_branch
      %674 = sbr.rel (0) target = $region57
    $region56: #{tpu_custom_call.1} parent=1 // pred_region
      %675 = dma.done [#allocation4], 128
    $region57: #{tpu_custom_call.1} parent=1 // pred_fallthru
      _
    // Predicated region
    $region58: #{tpu_custom_call.1} parent=1 // pred_check
      _
    $region59: #{tpu_custom_call.1} parent=1 // pred_check_branch
      %677 = sbr.rel (0) target = $region61
    $region60: #{tpu_custom_call.1} parent=1 // pred_region
      %678 = dma.done [#allocation8], 128
    $region61: #{tpu_custom_call.1} parent=1 // pred_fallthru
      _
    // Predicated region
    $region62: #{tpu_custom_call.1} parent=1 // pred_check
      _
    $region63: #{tpu_custom_call.1} parent=1 // pred_check_branch
      %680 = sbr.rel (0) target = $region65
    $region64: #{tpu_custom_call.1} parent=1 // pred_region
      %681 = dma.done [#allocation8], 128
    $region65: #{tpu_custom_call.1} parent=1 // pred_fallthru
      _
    // Predicated region
    $region66: #{tpu_custom_call.1} parent=1 // pred_check
      _
    $region67: #{tpu_custom_call.1} parent=1 // pred_check_branch
      %683 = sbr.rel (0) target = $region69
    $region68: #{tpu_custom_call.1} parent=1 // pred_region
      %684 = dma.done [#allocation5], 16
    $region69: #{tpu_custom_call.1} parent=1 // pred_fallthru
      _
    %685 = sfence
    %686 = vsyncpa [#allocation3], 1
    %687 = vsyncpa [#allocation4], 1
    %688 = vsyncpa [#allocation8], 1
    %689 = vsyncpa [#allocation5], 1

</llo_original>
